<compile_context>
chip_gen: v5e
topology: v5e:2x2
jax: 0.10.0
libtpu: 0.0.40
codegen_flags: <defaults>
</compile_context>

<pallas_src>
import math

import numpy as np
import jax
import jax.numpy as jnp
from jax.experimental import pallas as pl
from jax.experimental.pallas import tpu as pltpu


def _round_up(a: int, b: int) -> int:
    return ((a + b - 1) // b) * b


def _lane_constants(max_freq: int, omega: float) -> np.ndarray:
    """Per-output-lane constants, shape (5, F*F) float32.

    Rows: 0 freq_x (omega folded in), 1 phase_x, 2 freq_y, 3 phase_y, 4 amp (amp_k*amp_l).
    Lane j corresponds to (k = j // F, l = j % F) of the outer product.
    """
    F = 2 * max_freq + 1
    idx = np.arange(F)
    freq = (idx + 1) // 2                                   # 0, 1, 1, 2, 2, ...
    # idx==0 -> 1 ; idx odd -> sqrt2*cos(f*t) ; idx even>0 -> sqrt2*sin(f*t)=sqrt2*cos(f*t - pi/2)
    phase = np.where((idx > 0) & (idx % 2 == 0), -np.pi / 2.0, 0.0)
    amp = np.where(idx == 0, 1.0, math.sqrt(2.0))

    k = np.repeat(np.arange(F), F)                          # j // F
    l = np.tile(np.arange(F), F)                            # j %  F
    consts = np.stack([
        omega * freq[k].astype(np.float64),
        phase[k],
        omega * freq[l].astype(np.float64),
        phase[l],
        amp[k] * amp[l],
    ]).astype(np.float32)                                   # (5, F*F)
    return consts


def _ope_kernel(consts_ref, coords_ref, out_ref):
    # consts_ref: (5, FF)  block-invariant lane constants
    # coords_ref: (tn, 2)  row tile of coords
    # out_ref:    (tn, FF)
    freq_x = consts_ref[0:1, :]      # (1, FF) — consumed as sublane-replicated operands
    phase_x = consts_ref[1:2, :]
    freq_y = consts_ref[2:3, :]
    phase_y = consts_ref[3:4, :]
    amp = consts_ref[4:5, :]

    c = coords_ref[...]              # (tn, 2)
    x = c[:, 0:1]                    # (tn, 1); omega already folded into freq_x/freq_y
    y = c[:, 1:2]

    # One cosine per lane per axis; amplitudes folded into a single final multiply.
    cx = jnp.cos(x * freq_x + phase_x)       # (tn, FF)
    cy = jnp.cos(y * freq_y + phase_y)       # (tn, FF)
    out_ref[...] = (cx * cy) * amp


def ope_forward(coords: jax.Array, max_freq: int, omega: float,
                *, max_rows_per_step: int = 4096) -> jax.Array:
    """coords: (N, 2) float32 -> (N, (2*max_freq+1)**2) float32."""
    N = coords.shape[0]
    assert coords.shape[1] == 2
    F = 2 * max_freq + 1
    FF = F * F

    coords = coords.astype(jnp.float32)
    consts = jnp.asarray(_lane_constants(max_freq, omega))   # (5, FF)

    # --- tile / grid selection --------------------------------------------------------
    # Big tiles amortize the ~0.35us fixed per-step cost; an even number of steps keeps
    # both v7x TensorCores busy (grid axis is "parallel"). Per step VMEM (double-buffered
    # in+out, both lane-padded to 128): ~4 * tn * 512 B -> ~8 MiB at tn=4096, well inside
    # the explicit 32 MiB limit below on every generation.
    steps = pl.cdiv(N, max_rows_per_step)
    if N > 8 and steps % 2 == 1:
        steps += 1
    tn = min(_round_up(pl.cdiv(N, steps), 8), _round_up(N, 8))
    grid = pl.cdiv(N, tn)            # ragged last block handled by Pallas (no pad/slice)

    out = pl.pallas_call(
        _ope_kernel,
        out_shape=jax.ShapeDtypeStruct((N, FF), jnp.float32),
        grid=(grid,),
        in_specs=[
            pl.BlockSpec((5, FF), lambda i: (0, 0)),     # tiny block-invariant constants
            pl.BlockSpec((tn, 2), lambda i: (i, 0)),
        ],
        out_specs=pl.BlockSpec((tn, FF), lambda i: (i, 0)),
        compiler_params=pltpu.CompilerParams(
            dimension_semantics=("parallel",),
            vmem_limit_bytes=32 * 1024 * 1024,
        ),
    )(consts, coords)
    return out


def _ope_reference(coords, max_freq, omega):
    """Pure-JAX reference mirroring the PyTorch code."""
    F = 2 * max_freq + 1
    x = coords[:, 0:1] * omega
    y = coords[:, 1:2] * omega
    sqrt2 = math.sqrt(2.0)

    def embed(t):
        cols = [jnp.ones_like(t)]
        for i in range(1, max_freq + 1):
            cols.append(sqrt2 * jnp.cos(t * i))
            cols.append(sqrt2 * jnp.sin(t * i))
        return jnp.concatenate(cols, axis=-1)        # (N, F)

    X = embed(x)
    Y = embed(y)
    mat = X[:, :, None] * Y[:, None, :]              # row-major flatten == torch .view(N, -1)
    return mat.reshape(coords.shape[0], F * F)


if __name__ == "__main__":
    max_freq = 3          # -> F = 7, output dim F*F = 49
    omega = 0.5
    N = 16

    key = jax.random.PRNGKey(0)
    coords = jax.random.uniform(key, (N, 2), dtype=jnp.float32, minval=-1.0, maxval=1.0)

    out = jax.block_until_ready(ope_forward(coords, max_freq, omega))
    ref = _ope_reference(coords, max_freq, omega)
    assert out.shape == (N, (2 * max_freq + 1) ** 2)
    assert jnp.allclose(out, ref, atol=1e-5, rtol=1e-5), "mismatch vs reference"

    # Also exercise a non-multiple-of-tile N to validate the ragged-block path.
    coords2 = jax.random.uniform(jax.random.PRNGKey(1), (13, 2), dtype=jnp.float32,
                                 minval=-1.0, maxval=1.0)
    out2 = jax.block_until_ready(ope_forward(coords2, max_freq, omega))
    ref2 = _ope_reference(coords2, max_freq, omega)
    assert out2.shape == (13, (2 * max_freq + 1) ** 2)
    assert jnp.allclose(out2, ref2, atol=1e-5, rtol=1e-5), "mismatch vs reference (ragged)"

    print("KERNEL_OK")
</pallas_src>

<mosaic_0001>
module attributes {stable_mosaic.version = 11 : i64} {
  func.func @_ope_kernel(%arg0: i32, %arg1: memref<5x49xf32, #tpu.memory_space<vmem>>, %arg2: memref<8x2xf32, #tpu.memory_space<vmem>>, %arg3: memref<8x49xf32, #tpu.memory_space<vmem>>) attributes {dimension_semantics = [#tpu.dimension_semantics<parallel>], iteration_bounds = array<i64: 2>, scalar_prefetch = 0 : i64, scratch_operands = 0 : i64, tpu.core_type = #tpu.core_type<tc>, window_params = [{pipeline_mode = #tpu.pipeline_mode<synchronous>, transform_indices = @transform_0, window_bounds = array<i64: 5, 49>}, {transform_indices = @transform_1, window_bounds = array<i64: 8, 2>}, {transform_indices = @transform_2, window_bounds = array<i64: 8, 49>}]} {
    %c0 = arith.constant 0 : index
    %c0_0 = arith.constant 0 : index
    %0 = vector.load %arg1[%c0, %c0_0] : memref<5x49xf32, #tpu.memory_space<vmem>>, vector<1x49xf32>
    %c1 = arith.constant 1 : index
    %c0_1 = arith.constant 0 : index
    %1 = vector.load %arg1[%c1, %c0_1] : memref<5x49xf32, #tpu.memory_space<vmem>>, vector<1x49xf32>
    %c2 = arith.constant 2 : index
    %c0_2 = arith.constant 0 : index
    %2 = vector.load %arg1[%c2, %c0_2] : memref<5x49xf32, #tpu.memory_space<vmem>>, vector<1x49xf32>
    %c3 = arith.constant 3 : index
    %c0_3 = arith.constant 0 : index
    %3 = vector.load %arg1[%c3, %c0_3] : memref<5x49xf32, #tpu.memory_space<vmem>>, vector<1x49xf32>
    %c4 = arith.constant 4 : index
    %c0_4 = arith.constant 0 : index
    %4 = vector.load %arg1[%c4, %c0_4] : memref<5x49xf32, #tpu.memory_space<vmem>>, vector<1x49xf32>
    %c0_5 = arith.constant 0 : index
    %c0_6 = arith.constant 0 : index
    %5 = vector.load %arg2[%c0_5, %c0_6] : memref<8x2xf32, #tpu.memory_space<vmem>>, vector<8x2xf32>
    %6 = vector.extract_strided_slice %5 {offsets = [0, 0], sizes = [8, 1], strides = [1, 1]} : vector<8x2xf32> to vector<8x1xf32>
    %7 = vector.extract_strided_slice %5 {offsets = [0, 1], sizes = [8, 1], strides = [1, 1]} : vector<8x2xf32> to vector<8x1xf32>
    %8 = vector.broadcast %6 : vector<8x1xf32> to vector<8x49xf32>
    %9 = vector.broadcast %0 : vector<1x49xf32> to vector<8x49xf32>
    %10 = arith.mulf %8, %9 : vector<8x49xf32>
    %11 = vector.broadcast %1 : vector<1x49xf32> to vector<8x49xf32>
    %12 = arith.addf %10, %11 : vector<8x49xf32>
    %13 = math.cos %12 : vector<8x49xf32>
    %14 = vector.broadcast %7 : vector<8x1xf32> to vector<8x49xf32>
    %15 = vector.broadcast %2 : vector<1x49xf32> to vector<8x49xf32>
    %16 = arith.mulf %14, %15 : vector<8x49xf32>
    %17 = vector.broadcast %3 : vector<1x49xf32> to vector<8x49xf32>
    %18 = arith.addf %16, %17 : vector<8x49xf32>
    %19 = math.cos %18 : vector<8x49xf32>
    %20 = arith.mulf %13, %19 : vector<8x49xf32>
    %21 = vector.broadcast %4 : vector<1x49xf32> to vector<8x49xf32>
    %22 = arith.mulf %20, %21 : vector<8x49xf32>
    %c0_7 = arith.constant 0 : index
    %c0_8 = arith.constant 0 : index
    %23 = vector.load %arg3[%c0_7, %c0_8] : memref<8x49xf32, #tpu.memory_space<vmem>>, vector<8x49xf32>
    tpu.vector_store %arg3[%c0_7, %c0_8], %22 {strides = array<i32>} : memref<8x49xf32, #tpu.memory_space<vmem>>, vector<8x49xf32>,
    return
  }
  func.func @transform_0(%arg0: i32) -> (i32, i32) {
    %c0_i32 = arith.constant 0 : i32
    %c0_i32_0 = arith.constant 0 : i32
    %c0_i32_1 = arith.constant 0 : i32
    return %c0_i32, %c0_i32_0 : i32, i32
  }
  func.func @transform_1(%arg0: i32) -> (i32, i32) {
    %c0_i32 = arith.constant 0 : i32
    %c0_i32_0 = arith.constant 0 : i32
    return %arg0, %c0_i32 : i32, i32
  }
  func.func @transform_2(%arg0: i32) -> (i32, i32) {
    %c0_i32 = arith.constant 0 : i32
    %c0_i32_0 = arith.constant 0 : i32
    return %arg0, %c0_i32 : i32, i32
  }
}

</mosaic_0001>

<llo_original>
// kernel: tpu_custom_call.1
$region0: #{tpu_custom_call.1}
  #allocation0 [shape = 'u32[]', space=smem, size = 0x4, offset = 0x4, fixed_abs, tag = 'smem constant byte address 0x4 - core index']
  #allocation1 [shape = 'u32[72,128]{1,0:T(1,128)}', space=vmem, size = 0x9000, scoped, tag = 'internal scratch']
  %s0 = inlined_call_operand.vmem [shape: f32[5,49], index: 0, kind: input, shape index: {}]
  %s1 = inlined_call_operand.vmem [shape: f32[16,2], index: 1, kind: input, shape index: {}]
  %s2 = inlined_call_operand.hbm [shape: f32[16,49], index: 2, kind: output, shape index: {}]
  %s3 = sld [smem:[#allocation0]]
  $region41: #{tpu_custom_call.1} parent=0
    _
  %s5 = ssub.s32 1, %s3
  %s6 = scalar_select 0, %s5, %s3
  $region1: #{tpu_custom_call.1} parent=0
    #allocation2 [shape = 'u8[8192]{0}', space=vmem, size = 0x2000, scoped, tag = 'output window, operand 0']
    #allocation3 [shape = 's32[2]{0}', space=sflag, size = 0x8, scoped, tag = 'scoped memory for tpu_custom_call.1']
    %7 = vsyncpa [#allocation3], 0
    %s8 = scalar_lea.sflag [#allocation3], 1
    %9 = vsyncpa %s8, 0
    loop: start=0, step=1, limit=4
    $region2: #{tpu_custom_call.1} parent=1 // loop_pre_header
      _
    $region3: #{tpu_custom_call.1} parent=1 // loop_header
      %s11 = sphi 0, %s15
      %p12 = scmp.ge.s32.totalorder %s11, 4
      %s19 = sphi 0, %s19
      %s21 = sphi 0, %s19
      %s22 = sphi 0, %s21
      %s36 = sphi 0, %s22
      %s42 = sphi 0, %s44
      %s45 = sphi 0, %s42
      %s46 = sphi 0, %s45
      %s62 = sphi 0, %s46
      %s68 = sphi 0, %s70
      %s71 = sphi 0, %s68
      %s72 = sphi 0, %s71
      %s88 = sphi 0, %s72
    $region4: #{tpu_custom_call.1} parent=1 // loop_header_branch
      %14 = sbr.rel (%p12) target = $region8
    $region5: #{tpu_custom_call.1} parent=1 // loop_body
      %s16 = ssub.s32 %s11, 1
      %s17 = ssub.s32 %s11, 2
      %s18 = sadd.s32 %s11, 1
      %s20 = sadd.s32 %s19, 1
      %p23 = scmp.eq.s32.totalorder %s11, 1
      %p24 = scmp.ne.s32.totalorder %s19, %s21
      %p25 = scmp.eq.s32.totalorder %s11, 0
      %p26 = por %p24, %p25
      %p27 = scmp.ne.s32.totalorder %s19, %s21
      %p28 = scmp.eq.s32.totalorder %s16, 1
      %p29 = por %p27, %p28
      %p30 = scmp.ne.s32.totalorder %s21, %s22
      %p31 = scmp.eq.s32.totalorder %s16, 0
      %p32 = por %p30, %p31
      %p33 = scmp.ne.s32.totalorder %s21, %s22
      %p34 = scmp.eq.s32.totalorder %s17, 1
      %p35 = por %p33, %p34
      %p37 = scmp.ne.s32.totalorder %s22, %s36
      %p38 = scmp.eq.s32.totalorder %s17, 0
      %p39 = por %p37, %p38
      %s40 = ssub.s32 %s11, %s18
      %p41 = scmp.eq.s32.totalorder %s40, 0
      %s43 = sadd.s32 %s42, 1
      %s44 = scalar_select %p41, %s42, %s43
      %p47 = pneg %p41
      %p48 = scmp.eq.s32.totalorder %s11, 1
      %p49 = por %p47, %p48
      %p50 = scmp.ne.s32.totalorder %s42, %s45
      %p51 = scmp.eq.s32.totalorder %s11, 0
      %p52 = por %p50, %p51
      %p53 = scmp.ne.s32.totalorder %s42, %s45
      %p54 = scmp.eq.s32.totalorder %s16, 1
      %p55 = por %p53, %p54
      %p56 = scmp.ne.s32.totalorder %s45, %s46
      %p57 = scmp.eq.s32.totalorder %s16, 0
      %p58 = por %p56, %p57
      %p59 = scmp.ne.s32.totalorder %s45, %s46
      %p60 = scmp.eq.s32.totalorder %s17, 1
      %p61 = por %p59, %p60
      %p63 = scmp.ne.s32.totalorder %s46, %s62
      %p64 = scmp.eq.s32.totalorder %s17, 0
      %p65 = por %p63, %p64
      %s66 = ssub.s32 %s11, %s18
      %p67 = scmp.eq.s32.totalorder %s66, 0
      %s69 = sadd.s32 %s68, 1
      %s70 = scalar_select %p67, %s68, %s69
      %p73 = pneg %p67
      %p74 = scmp.eq.s32.totalorder %s11, 1
      %p75 = por %p73, %p74
      %p76 = scmp.ne.s32.totalorder %s68, %s71
      %p77 = scmp.eq.s32.totalorder %s11, 0
      %p78 = por %p76, %p77
      %p79 = scmp.ne.s32.totalorder %s68, %s71
      %p80 = scmp.eq.s32.totalorder %s16, 1
      %p81 = por %p79, %p80
      %p82 = scmp.ne.s32.totalorder %s71, %s72
      %p83 = scmp.eq.s32.totalorder %s16, 0
      %p84 = por %p82, %p83
      %p85 = scmp.ne.s32.totalorder %s71, %s72
      %p86 = scmp.eq.s32.totalorder %s17, 1
      %p87 = por %p85, %p86
      %p89 = scmp.ne.s32.totalorder %s72, %s88
      %p90 = scmp.eq.s32.totalorder %s17, 0
      %p91 = por %p89, %p90
      %p92 = scmp.le.s32.totalorder 1, %s11
      %p93 = scmp.lt.s32.totalorder %s11, 3
      %p94 = pnand %p92, %p93
      %p95 = pneg %p94
      // Predicated region
      $region9: #{tpu_custom_call.1} parent=5 // pred_check
        _
      $region10: #{tpu_custom_call.1} parent=5 // pred_check_branch
        %97 = sbr.rel (%p94) target = $region12
      $region11: #{tpu_custom_call.1} parent=5 // pred_region
        %s98 = ssub.s32 %s11, 1
        // Predicated region
        $region13: #{tpu_custom_call.1} parent=11 // pred_check
          %p99 = pneg %p32
        $region14: #{tpu_custom_call.1} parent=11 // pred_check_branch
          %101 = sbr.rel (%p99) target = $region16
        $region15: #{tpu_custom_call.1} parent=11 // pred_region
          _
        $region16: #{tpu_custom_call.1} parent=11 // pred_fallthru
          _
      $region12: #{tpu_custom_call.1} parent=5 // pred_fallthru
        _
      %p102 = scmp.lt.s32.totalorder %s11, 2
      // Predicated region
      $region17: #{tpu_custom_call.1} parent=5 // pred_check
        %p103 = pneg %p102
      $region18: #{tpu_custom_call.1} parent=5 // pred_check_branch
        %105 = sbr.rel (%p103) target = $region20
      $region19: #{tpu_custom_call.1} parent=5 // pred_region
        // Predicated region
        $region21: #{tpu_custom_call.1} parent=19 // pred_check
          %p106 = pneg %p52
        $region22: #{tpu_custom_call.1} parent=19 // pred_check_branch
          %108 = sbr.rel (%p106) target = $region24
        $region23: #{tpu_custom_call.1} parent=19 // pred_region
          %p109 = scmp.lt.s32.totalorder %s11, 1
          %s110 = scalar_select %p109, %s11, 1
          %s111 = smul.addr %s110, 8
          %s112 = scalar_lea.vmem %s1, %s111
        $region24: #{tpu_custom_call.1} parent=19 // pred_fallthru
          _
      $region20: #{tpu_custom_call.1} parent=5 // pred_fallthru
        _
      %p113 = scmp.le.s32.totalorder 1, %s11
      %p114 = scmp.lt.s32.totalorder %s11, 3
      %p115 = pnand %p113, %p114
      %p116 = pneg %p115
      // Predicated region
      $region25: #{tpu_custom_call.1} parent=5 // pred_check
        _
      $region26: #{tpu_custom_call.1} parent=5 // pred_check_branch
        %118 = sbr.rel (%p115) target = $region28
      $region27: #{tpu_custom_call.1} parent=5 // pred_region
        %s119 = ssub.s32 %s11, 1
        %p120 = pneg %p32
        %p121 = pneg %p29
        %p122 = scmp.lt.s32.totalorder %s16, 1
        %s123 = scalar_select %p122, %s16, 1
        %s124 = smul.addr %s123, 8
        %s125 = scalar_lea.vmem %s1, %s124
        %p126 = pneg %p58
        %p127 = pneg %p55
        %p128 = pneg %p84
        %p129 = pneg %p81
        %s130 = sand.u32 %s71, 1
        %s131 = scalar_lea.sflag [#allocation3], %s130
        %s132 = sand.u32 %s71, 1
        %s133 = smul.addr %s132, 8
        %s134 = scalar_lea.vmem [#allocation2], %s133
        %p135 = scmp.lt.s32.totalorder %s16, 1
        %s136 = scalar_select %p135, %s16, 1
        %s137 = smul.addr %s136, 8
        %s138 = scalar_lea.vmem %s1, %s137
        %v139 = vld [vmem:[%s0] sm:$0x1]
        %v140 = vld [vmem:[%s0 + $0x1] sm:$0x1]
        %v141 = vld [vmem:[%s0 + $0x2] sm:$0x1]
        %v142 = vld [vmem:[%s0 + $0x3] sm:$0x1]
        %v143 = vld [vmem:[%s0 + $0x4] sm:$0x1]
        %v144 = vld [vmem:[%s138] sm:$0xff]
        %146 = vset.pattern.permute.xlu0 0
        %147 = vperm.xlu0 %146, %v144
        %v148 = vpop.permute.xlu0 %147
        %v150 = vperm.slane %v139, 0
        %v151 = vmul.f32 %v148, %v150
        %v152 = vperm.slane %v140, 0
        %v153 = vadd.f32 %v151, %v152
        %v154 = vand.u32 2147483647, %v153
        %vm155 = vcmp.le.f32.partialorder %v154, 0.7853982
        %vm156 = vcmp.lt.s32.totalorder %v153, 0
        %v157 = vand.u32 %v153, 2139095040
        %v158 = vshrl.u32 %v157, 23
        %v159 = vsub.s32 %v158, 127
        %v160 = vand.u32 2147483647, %v153
        %v161 = vand.u32 %v160, 8388607
        %v162 = vor.u32 %v161, 8388608
        %v163 = vsub.s32 0, %v162
        %v164 = vadd.s32 %v159, 1
        %vm165 = vcmp.gt.s32.totalorder %v164, 0
        %v166 = vsel %vm165, %v164, 0
        %v167 = vshrl.u32 %v166, 5
        %v168 = vand.u32 %v166, 31
        %v169 = vsub.s32 32, %v168
        %v170 = vshrl.u32 683565275, %v169
        %v171 = vshll.u32 683565275, %v168
        %v172 = vshrl.u32 2475754826, %v169
        %v173 = vor.u32 %v171, %v172
        %v174 = vshll.u32 2475754826, %v168
        %v175 = vshrl.u32 2131351028, %v169
        %v176 = vor.u32 %v174, %v175
        %v177 = vshll.u32 2131351028, %v168
        %v178 = vshrl.u32 2102212464, %v169
        %v179 = vor.u32 %v177, %v178
        %v180 = vshll.u32 2102212464, %v168
        %v181 = vshrl.u32 920167782, %v169
        %v182 = vor.u32 %v180, %v181
        %v183 = vshll.u32 920167782, %v168
        %v184 = vshrl.u32 1326507024, %v169
        %v185 = vor.u32 %v183, %v184
        %vm186 = vcmp.lt.s32.totalorder %v167, 1
        %vm187 = vcmp.lt.s32.totalorder %v167, 2
        %vm188 = vcmp.lt.s32.totalorder %v167, 3
        %vm189 = vcmp.lt.s32.totalorder %v167, 4
        %v190 = vsel %vm186, %v170, %v173
        %v191 = vsel %vm189, %v179, 2102212464
        %v192 = vsel %vm188, %v176, %v191
        %v193 = vsel %vm187, %v190, %v192
        %v194 = vsel %vm186, %v173, %v176
        %v195 = vsel %vm189, %v182, 920167782
        %v196 = vsel %vm188, %v179, %v195
        %v197 = vsel %vm187, %v194, %v196
        %v198 = vsel %vm186, %v176, %v179
        %v199 = vsel %vm189, %v185, 1326507024
        %v200 = vsel %vm188, %v182, %v199
        %v201 = vsel %vm187, %v198, %v200
        %v202 = vshll.u32 %v162, 8
        %v203 = vand.u32 %v202, 65535
        %v204 = vshrl.u32 %v202, 16
        %v205 = vand.u32 %v201, 65535
        %v206 = vshrl.u32 %v201, 16
        %v207 = vmul.u32 %v203, %v205
        %v208 = vmul.u32 %v203, %v206
        %v209 = vmul.u32 %v204, %v205
        %v210 = vmul.u32 %v204, %v206
        %v211 = vshll.u32 %v208, 16
        %v212 = vshrl.u32 %v208, 16
        %v213 = vshll.u32 %v209, 16
        %v214 = vshrl.u32 %v209, 16
        %vm215 = vc.u32 %v207, %v211
        %v216 = vsel %vm215, 1, 0
        %v217 = vadd.s32 %v207, %v211
        %v218 = vadd.s32 %v210, %v216
        %vm219 = vc.u32 %v217, %v213
        %v220 = vsel %vm219, 1, 0
        %v221 = vadd.s32 %v217, %v213
        %v222 = vadd.s32 %v218, %v220
        %v223 = vadd.s32 %v222, %v212
        %v224 = vadd.s32 %v223, %v214
        %v225 = vand.u32 %v202, 65535
        %v226 = vshrl.u32 %v202, 16
        %v227 = vand.u32 %v197, 65535
        %v228 = vshrl.u32 %v197, 16
        %v229 = vmul.u32 %v225, %v227
        %v230 = vmul.u32 %v225, %v228
        %v231 = vmul.u32 %v226, %v227
        %v232 = vmul.u32 %v226, %v228
        %v233 = vshll.u32 %v230, 16
        %v234 = vshrl.u32 %v230, 16
        %v235 = vshll.u32 %v231, 16
        %v236 = vshrl.u32 %v231, 16
        %vm237 = vc.u32 %v229, %v233
        %v238 = vsel %vm237, 1, 0
        %v239 = vadd.s32 %v229, %v233
        %v240 = vadd.s32 %v232, %v238
        %vm241 = vc.u32 %v239, %v235
        %v242 = vsel %vm241, 1, 0
        %v243 = vadd.s32 %v239, %v235
        %v244 = vadd.s32 %v240, %v242
        %v245 = vadd.s32 %v244, %v234
        %v246 = vadd.s32 %v245, %v236
        %v247 = vmul.u32 %v202, %v193
        %v248 = vadd.s32 %v224, %v243
        %vm249 = vc.u32 %v224, %v243
        %v250 = vadd.s32 %v246, 1
        %v251 = vsel %vm249, %v250, %v246
        %v252 = vadd.s32 %v247, %v251
        %v253 = vadd.s32 %v252, 536870912
        %v254 = vshrl.u32 %v253, 30
        %v255 = vshll.u32 %v254, 30
        %v256 = vsub.s32 %v252, %v255
        %vm257 = vcmp.lt.s32.totalorder %v256, 0
        %v258 = vsub.s32 0, %v256
        %v259 = vsel %vm257, %v258, %v256
        %v260 = vclz %v259
        %v261 = vsub.s32 %v260, 2
        %vm262 = vcmp.gt.s32.totalorder 0, %v261
        %v263 = vsel %vm262, 0, %v261
        %v264 = vsub.s32 32, %v263
        %v265 = vshll.u32 %v256, %v263
        %v266 = vshrl.u32 %v248, %v264
        %v267 = vor.u32 %v265, %v266
        %v268 = vsub.s32 4294967266, %v263
        %v269 = vadd.s32 %v268, 127
        %v270 = vshll.u32 %v269, 23
        %v271 = vor.u32 4788187, %v270
        %v272 = vand.u32 2147483647, %v271
        %v274 = vcvt.s32.f32 %v267
        %v275 = vmul.f32 %v274, %v272
        %v276 = vxor.u32 %v275, 2147483648
        %v277 = vsel %vm156, %v276, %v275
        %v278 = vsub.s32 4, %v254
        %v279 = vsel %vm156, %v278, %v254
        %v280 = vsel %vm155, %v153, %v277
        %v281 = vsel %vm155, 0, %v279
        %v282 = vmul.f32 %v280, %v280
        %v283 = vmul.f32 %v282, -0.001358992
        %v284 = vadd.f32 %v283, 0.041655596
        %v285 = vmul.f32 %v282, %v284
        %v286 = vadd.f32 %v285, -0.4999988
        %v287 = vmul.f32 %v282, %v286
        %v288 = vadd.f32 1.0, %v287
        %v289 = vmul.f32 %v280, %v280
        %v290 = vmul.f32 %v289, -0.00019511016
        %v291 = vadd.f32 %v290, 0.008332121
        %v292 = vmul.f32 %v289, %v291
        %v293 = vadd.f32 %v292, -0.16666654
        %v294 = vmul.f32 %v289, %v293
        %v295 = vadd.f32 %v294, 1.0
        %v296 = vmul.f32 %v295, %v280
        %vm297 = vweird.f32 %v153
        %v298 = vand.u32 %v281, 3
        %vm299 = vcmp.lt.s32.totalorder %v298, 2
        %vm300 = vcmp.eq.s32.totalorder %v298, 0
        %v301 = vxor.u32 %v296, 2147483648
        %v302 = vsel %vm300, %v288, %v301
        %vm303 = vcmp.eq.s32.totalorder %v298, 2
        %v304 = vxor.u32 %v288, 2147483648
        %v305 = vsel %vm303, %v304, %v296
        %v306 = vsel %vm299, %v302, %v305
        %v307 = vsel %vm297, nan, %v306
        %308 = vset.pattern.permute.xlu0 1
        %309 = vperm.xlu0 %308, %v144
        %v310 = vpop.permute.xlu0 %309
        %v312 = vperm.slane %v141, 0
        %v313 = vmul.f32 %v310, %v312
        %v314 = vperm.slane %v142, 0
        %v315 = vadd.f32 %v313, %v314
        %v316 = vand.u32 2147483647, %v315
        %vm317 = vcmp.le.f32.partialorder %v316, 0.7853982
        %vm318 = vcmp.lt.s32.totalorder %v315, 0
        %v319 = vand.u32 %v315, 2139095040
        %v320 = vshrl.u32 %v319, 23
        %v321 = vsub.s32 %v320, 127
        %v322 = vand.u32 2147483647, %v315
        %v323 = vand.u32 %v322, 8388607
        %v324 = vor.u32 %v323, 8388608
        %v325 = vsub.s32 0, %v324
        %v326 = vadd.s32 %v321, 1
        %vm327 = vcmp.gt.s32.totalorder %v326, 0
        %v328 = vsel %vm327, %v326, 0
        %v329 = vshrl.u32 %v328, 5
        %v330 = vand.u32 %v328, 31
        %v331 = vsub.s32 32, %v330
        %v332 = vshrl.u32 683565275, %v331
        %v333 = vshll.u32 683565275, %v330
        %v334 = vshrl.u32 2475754826, %v331
        %v335 = vor.u32 %v333, %v334
        %v336 = vshll.u32 2475754826, %v330
        %v337 = vshrl.u32 2131351028, %v331
        %v338 = vor.u32 %v336, %v337
        %v339 = vshll.u32 2131351028, %v330
        %v340 = vshrl.u32 2102212464, %v331
        %v341 = vor.u32 %v339, %v340
        %v342 = vshll.u32 2102212464, %v330
        %v343 = vshrl.u32 920167782, %v331
        %v344 = vor.u32 %v342, %v343
        %v345 = vshll.u32 920167782, %v330
        %v346 = vshrl.u32 1326507024, %v331
        %v347 = vor.u32 %v345, %v346
        %vm348 = vcmp.lt.s32.totalorder %v329, 1
        %vm349 = vcmp.lt.s32.totalorder %v329, 2
        %vm350 = vcmp.lt.s32.totalorder %v329, 3
        %vm351 = vcmp.lt.s32.totalorder %v329, 4
        %v352 = vsel %vm348, %v332, %v335
        %v353 = vsel %vm351, %v341, 2102212464
        %v354 = vsel %vm350, %v338, %v353
        %v355 = vsel %vm349, %v352, %v354
        %v356 = vsel %vm348, %v335, %v338
        %v357 = vsel %vm351, %v344, 920167782
        %v358 = vsel %vm350, %v341, %v357
        %v359 = vsel %vm349, %v356, %v358
        %v360 = vsel %vm348, %v338, %v341
        %v361 = vsel %vm351, %v347, 1326507024
        %v362 = vsel %vm350, %v344, %v361
        %v363 = vsel %vm349, %v360, %v362
        %v364 = vshll.u32 %v324, 8
        %v365 = vand.u32 %v364, 65535
        %v366 = vshrl.u32 %v364, 16
        %v367 = vand.u32 %v363, 65535
        %v368 = vshrl.u32 %v363, 16
        %v369 = vmul.u32 %v365, %v367
        %v370 = vmul.u32 %v365, %v368
        %v371 = vmul.u32 %v366, %v367
        %v372 = vmul.u32 %v366, %v368
        %v373 = vshll.u32 %v370, 16
        %v374 = vshrl.u32 %v370, 16
        %v375 = vshll.u32 %v371, 16
        %v376 = vshrl.u32 %v371, 16
        %vm377 = vc.u32 %v369, %v373
        %v378 = vsel %vm377, 1, 0
        %v379 = vadd.s32 %v369, %v373
        %v380 = vadd.s32 %v372, %v378
        %vm381 = vc.u32 %v379, %v375
        %v382 = vsel %vm381, 1, 0
        %v383 = vadd.s32 %v379, %v375
        %v384 = vadd.s32 %v380, %v382
        %v385 = vadd.s32 %v384, %v374
        %v386 = vadd.s32 %v385, %v376
        %v387 = vand.u32 %v364, 65535
        %v388 = vshrl.u32 %v364, 16
        %v389 = vand.u32 %v359, 65535
        %v390 = vshrl.u32 %v359, 16
        %v391 = vmul.u32 %v387, %v389
        %v392 = vmul.u32 %v387, %v390
        %v393 = vmul.u32 %v388, %v389
        %v394 = vmul.u32 %v388, %v390
        %v395 = vshll.u32 %v392, 16
        %v396 = vshrl.u32 %v392, 16
        %v397 = vshll.u32 %v393, 16
        %v398 = vshrl.u32 %v393, 16
        %vm399 = vc.u32 %v391, %v395
        %v400 = vsel %vm399, 1, 0
        %v401 = vadd.s32 %v391, %v395
        %v402 = vadd.s32 %v394, %v400
        %vm403 = vc.u32 %v401, %v397
        %v404 = vsel %vm403, 1, 0
        %v405 = vadd.s32 %v401, %v397
        %v406 = vadd.s32 %v402, %v404
        %v407 = vadd.s32 %v406, %v396
        %v408 = vadd.s32 %v407, %v398
        %v409 = vmul.u32 %v364, %v355
        %v410 = vadd.s32 %v386, %v405
        %vm411 = vc.u32 %v386, %v405
        %v412 = vadd.s32 %v408, 1
        %v413 = vsel %vm411, %v412, %v408
        %v414 = vadd.s32 %v409, %v413
        %v415 = vadd.s32 %v414, 536870912
        %v416 = vshrl.u32 %v415, 30
        %v417 = vshll.u32 %v416, 30
        %v418 = vsub.s32 %v414, %v417
        %vm419 = vcmp.lt.s32.totalorder %v418, 0
        %v420 = vsub.s32 0, %v418
        %v421 = vsel %vm419, %v420, %v418
        %v422 = vclz %v421
        %v423 = vsub.s32 %v422, 2
        %vm424 = vcmp.gt.s32.totalorder 0, %v423
        %v425 = vsel %vm424, 0, %v423
        %v426 = vsub.s32 32, %v425
        %v427 = vshll.u32 %v418, %v425
        %v428 = vshrl.u32 %v410, %v426
        %v429 = vor.u32 %v427, %v428
        %v430 = vsub.s32 4294967266, %v425
        %v431 = vadd.s32 %v430, 127
        %v432 = vshll.u32 %v431, 23
        %v433 = vor.u32 4788187, %v432
        %v434 = vand.u32 2147483647, %v433
        %v436 = vcvt.s32.f32 %v429
        %v437 = vmul.f32 %v436, %v434
        %v438 = vxor.u32 %v437, 2147483648
        %v439 = vsel %vm318, %v438, %v437
        %v440 = vsub.s32 4, %v416
        %v441 = vsel %vm318, %v440, %v416
        %v442 = vsel %vm317, %v315, %v439
        %v443 = vsel %vm317, 0, %v441
        %v444 = vmul.f32 %v442, %v442
        %v445 = vmul.f32 %v444, -0.001358992
        %v446 = vadd.f32 %v445, 0.041655596
        %v447 = vmul.f32 %v444, %v446
        %v448 = vadd.f32 %v447, -0.4999988
        %v449 = vmul.f32 %v444, %v448
        %v450 = vadd.f32 1.0, %v449
        %v451 = vmul.f32 %v442, %v442
        %v452 = vmul.f32 %v451, -0.00019511016
        %v453 = vadd.f32 %v452, 0.008332121
        %v454 = vmul.f32 %v451, %v453
        %v455 = vadd.f32 %v454, -0.16666654
        %v456 = vmul.f32 %v451, %v455
        %v457 = vadd.f32 %v456, 1.0
        %v458 = vmul.f32 %v457, %v442
        %vm459 = vweird.f32 %v315
        %v460 = vand.u32 %v443, 3
        %vm461 = vcmp.lt.s32.totalorder %v460, 2
        %vm462 = vcmp.eq.s32.totalorder %v460, 0
        %v463 = vxor.u32 %v458, 2147483648
        %v464 = vsel %vm462, %v450, %v463
        %vm465 = vcmp.eq.s32.totalorder %v460, 2
        %v466 = vxor.u32 %v450, 2147483648
        %v467 = vsel %vm465, %v466, %v458
        %v468 = vsel %vm461, %v464, %v467
        %v469 = vsel %vm459, nan, %v468
        %v470 = vmul.f32 %v307, %v469
        %v471 = vperm.slane %v143, 0
        %v472 = vmul.f32 %v470, %v471
        %vm473 = vcmask 400384
        %474 = vst.msk [vmem:[%s134] sm:$0xff] %vm473, %v472
        %s475 = sand.u32 %s71, 1
        %s476 = scalar_lea.sflag [#allocation3], %s475
        %s477 = sand.u32 %s71, 1
        %s478 = smul.addr %s477, 8
        %s479 = scalar_lea.vmem [#allocation2], %s478
        // Predicated region
        $region29: #{tpu_custom_call.1} parent=27 // pred_check
          %p480 = pneg %p81
        $region30: #{tpu_custom_call.1} parent=27 // pred_check_branch
          %482 = sbr.rel (%p480) target = $region32
        $region31: #{tpu_custom_call.1} parent=27 // pred_region
          %484 = vsyncadd %s476, 0
          %s485 = smul.addr %s16, 8
          %s486 = scalar_lea.hbm %s2, %s485
          %s488 = sshll.u32 %s479, 4
          %s489 = int_to_ptr.vmem [resolvable:$true] %s488
          %s490 = sshll.u32 %s486, 4
          %s491 = int_to_ptr.hbm [resolvable:$true] %s490
          %493 = dma.vmem_to_hbm [thread:$0]  %s489, 128, %s491, %s476
        $region32: #{tpu_custom_call.1} parent=27 // pred_fallthru
          _
      $region28: #{tpu_custom_call.1} parent=5 // pred_fallthru
        _
      %p494 = scmp.le.s32.totalorder 2, %s11
      // Predicated region
      $region33: #{tpu_custom_call.1} parent=5 // pred_check
        %p495 = pneg %p494
      $region34: #{tpu_custom_call.1} parent=5 // pred_check_branch
        %497 = sbr.rel (%p495) target = $region36
      $region35: #{tpu_custom_call.1} parent=5 // pred_region
        %s498 = ssub.s32 %s11, 2
        // Predicated region
        $region37: #{tpu_custom_call.1} parent=35 // pred_check
          %p499 = pneg %p87
        $region38: #{tpu_custom_call.1} parent=35 // pred_check_branch
          %501 = sbr.rel (%p499) target = $region40
        $region39: #{tpu_custom_call.1} parent=35 // pred_region
          %s502 = sand.u32 %s72, 1
          %s503 = scalar_lea.sflag [#allocation3], %s502
          %s504 = sand.u32 %s72, 1
          %s505 = smul.addr %s504, 8
          %s506 = scalar_lea.vmem [#allocation2], %s505
          %508 = dma.done %s503, 128
        $region40: #{tpu_custom_call.1} parent=35 // pred_fallthru
          _
      $region36: #{tpu_custom_call.1} parent=5 // pred_fallthru
        _
    $region6: #{tpu_custom_call.1} parent=1 // loop_footer
      %s15 = sadd.s32 1, %s11
    $region7: #{tpu_custom_call.1} parent=1 // loop_footer_branch
      %10 = sbr.rel target = $region3
    $region8: #{tpu_custom_call.1} parent=1 // loop_exit
      _
    %509 = vsyncpa [#allocation3], 1
    %s510 = scalar_lea.sflag [#allocation3], 1
    %511 = vsyncpa %s510, 1

</llo_original>
